<compile_context>
chip_gen: v6e
topology: v6e:2x2x1
jax: 0.10.0
libtpu: 0.0.40
codegen_flags: <defaults>
</compile_context>

<pallas_src>
import jax
import jax.numpy as jnp
from jax import lax
from jax.experimental import pallas as pl
from jax.experimental.pallas import tpu as pltpu

EPS = 1e-5
VMEM_LIMIT_BYTES = 48 * 1024 * 1024   # > v5e 16 MiB scoped default, < v7x 64 MiB physical


# --------------------------------------------------------------------------
# Pass 1: per-tile per-channel sum and sum-of-squares partials.
# x_ref: (TP1, Cpad) in compute dtype; out_ref: (8, Cpad) f32
#   row 0 = sum, row 1 = sum of squares, rows 2..7 = 0.
# --------------------------------------------------------------------------
def bn_stats_kernel(x_ref, out_ref):
    x = x_ref[...].astype(jnp.float32)          # squares & accumulation in f32
    s = jnp.sum(x, axis=0, keepdims=True)
    q = jnp.sum(x * x, axis=0, keepdims=True)
    pad = jnp.zeros((6, x.shape[-1]), jnp.float32)
    out_ref[...] = jnp.concatenate([s, q, pad], axis=0)


# --------------------------------------------------------------------------
# Pass 2: BN affine + ReLU + (pool-fused) 1x1 conv, tiled over P.
# x_ref: (4, TP, Cpad)  w_ref: (Cpad, Copad)  scale/shift: (1, Cpad)
# all in compute dtype; o_ref: (TP, Copad) in out dtype.
# --------------------------------------------------------------------------
def transition_kernel(x_ref, w_ref, scale_ref, shift_ref, o_ref):
    scale = scale_ref[...]
    shift = shift_ref[...]

    # BN affine + ReLU per pool-window position, summed; the 0.25 avg-pool
    # factor is pre-folded into the conv weight.  Stays in compute dtype
    # (bf16 on v6e/v7x) and feeds the MXU directly; f32 accumulation.
    y = (jnp.maximum(x_ref[0] * scale + shift, 0.0)
         + jnp.maximum(x_ref[1] * scale + shift, 0.0)
         + jnp.maximum(x_ref[2] * scale + shift, 0.0)
         + jnp.maximum(x_ref[3] * scale + shift, 0.0))

    out = jnp.dot(y, w_ref[...], preferred_element_type=jnp.float32)
    o_ref[...] = out.astype(o_ref.dtype)


# --------------------------------------------------------------------------
# Wrapper
# --------------------------------------------------------------------------
def _round_up(x, m):
    return ((x + m - 1) // m) * m


def _choose_tile_p(p, cpad, copad, stage_bytes, out_bytes):
    # Budget against the explicit vmem_limit (with headroom), counting:
    #   2x input block (4, TP, Cpad), 2x output block (TP, Copad),
    #   1x weight (Buffered(1)), scale/shift, and the in-kernel y /
    #   matmul-result temporaries.
    budget = int(VMEM_LIMIT_BYTES * 0.70)
    fixed = cpad * copad * stage_bytes + 2 * cpad * 4
    per_row = (2 * 4 * cpad * stage_bytes      # double-buffered input rows
               + 2 * copad * out_bytes         # double-buffered output rows
               + cpad * (stage_bytes + 4)      # y temp + slack
               + copad * 4)                    # f32 matmul result
    tp = (budget - fixed) // per_row
    tp = max(16, min(2048, int(tp)))
    tp = min(tp, max(16, _round_up(p, 16)))
    return max(16, (tp // 16) * 16)            # multiple of 16: bf16 sublane packing


def transition_forward(x_nchw, w_oihw, gamma, beta, *,
                       compute_dtype=jnp.bfloat16, out_dtype=None, tile_p=None):
    """x_nchw: (N, Cin, H, W); w_oihw: (Cout, Cin, 1, 1); gamma/beta: (Cin,).

    compute_dtype: staging / BN-affine / MXU-operand dtype (bf16 default;
    pass jnp.float32 for a tight-accuracy path).  Stats and the matmul
    accumulator are always f32.
    """
    n, cin, h, w = x_nchw.shape
    cout = w_oihw.shape[0]
    oh, ow = h // 2, w // 2
    p = n * oh * ow
    if out_dtype is None:
        out_dtype = x_nchw.dtype

    cpad = _round_up(cin, 128)           # lane-dense input channels
    copad = _round_up(cout, 128)         # lane-dense output channels
    stage_bytes = jnp.dtype(compute_dtype).itemsize
    out_bytes = jnp.dtype(out_dtype).itemsize
    if tile_p is None:
        tile_p = _choose_tile_p(p, cpad, copad, stage_bytes, out_bytes)
    p_pad = _round_up(p, tile_p)
    num_tiles = p_pad // tile_p

    # Single staging copy (the unavoidable NCHW -> channels-minor transpose),
    # fused by XLA with the compute-dtype cast and zero-padding:
    #   NCHW -> (4, P_pad, Cpad): pool-window positions leading, channels on
    #   the lane axis.  Padded rows/channels are zero => contribute nothing to
    #   the stats or the matmul.
    xw = x_nchw.astype(compute_dtype).reshape(n, cin, oh, 2, ow, 2)
    xw = jnp.transpose(xw, (3, 5, 0, 2, 4, 1)).reshape(4, p, cin)
    xw = jnp.pad(xw, ((0, 0), (0, p_pad - p), (0, cpad - cin)))

    # ---- Pass 1: per-channel batch statistics (parallel partials) ----
    xs2d = xw.reshape(4 * p_pad, cpad)         # free view of the staged copy
    nt1 = 4 * num_tiles
    partials = pl.pallas_call(
        bn_stats_kernel,
        out_shape=jax.ShapeDtypeStruct((nt1 * 8, cpad), jnp.float32),
        grid=(nt1,),
        in_specs=[pl.BlockSpec((tile_p, cpad), lambda i: (i, 0))],
        out_specs=pl.BlockSpec((8, cpad), lambda i: (i, 0)),
        compiler_params=pltpu.CompilerParams(
            dimension_semantics=("parallel",),
            vmem_limit_bytes=VMEM_LIMIT_BYTES),
    )(xs2d)

    totals = partials.reshape(nt1, 8, cpad).sum(axis=0)   # tiny reduction
    csum, csq = totals[0], totals[1]

    count = jnp.float32(n * h * w)                         # true (unpadded) count
    mean = csum / count
    var = jnp.maximum(csq / count - mean * mean, 0.0)      # biased var, clamped >= 0
    inv = lax.rsqrt(var + EPS)
    gamma_p = jnp.pad(gamma.astype(jnp.float32), (0, cpad - cin))
    beta_p = jnp.pad(beta.astype(jnp.float32), (0, cpad - cin))
    scale = (gamma_p * inv).reshape(1, cpad).astype(compute_dtype)
    shift = (beta_p - mean * gamma_p * inv).reshape(1, cpad).astype(compute_dtype)

    # 1x1-conv weight (Cin, Cout), pool average folded in, padded, compute dtype.
    w_mat = jnp.transpose(w_oihw[:, :, 0, 0], (1, 0)) * 0.25
    w_mat = jnp.pad(w_mat, ((0, cpad - cin), (0, copad - cout))).astype(compute_dtype)

    # ---- Pass 2: BN affine + ReLU + fused pool / 1x1 conv ----
    out_flat = pl.pallas_call(
        transition_kernel,
        out_shape=jax.ShapeDtypeStruct((p_pad, copad), out_dtype),
        grid=(num_tiles,),
        in_specs=[
            pl.BlockSpec((4, tile_p, cpad), lambda i: (0, i, 0)),
            # Grid-invariant operands: single VMEM buffer (no double-buffering).
            pl.BlockSpec((cpad, copad), lambda i: (0, 0),
                         pipeline_mode=pl.Buffered(1)),
            pl.BlockSpec((1, cpad), lambda i: (0, 0),
                         pipeline_mode=pl.Buffered(1)),
            pl.BlockSpec((1, cpad), lambda i: (0, 0),
                         pipeline_mode=pl.Buffered(1)),
        ],
        out_specs=pl.BlockSpec((tile_p, copad), lambda i: (i, 0)),
        compiler_params=pltpu.CompilerParams(
            dimension_semantics=("parallel",),
            vmem_limit_bytes=VMEM_LIMIT_BYTES),
    )(xw, w_mat, scale, shift)

    out = out_flat[:p, :cout].reshape(n, oh, ow, cout)
    # TODO(synk): return NHWC directly when the consumer accepts it; this
    # transpose only exists to match the PyTorch NCHW contract.
    return jnp.transpose(out, (0, 3, 1, 2))


# --------------------------------------------------------------------------
# Pure-JAX reference (emulates the PyTorch forward, train-mode BN, f32).
# --------------------------------------------------------------------------
def transition_reference(x_nchw, w_oihw, gamma, beta):
    mean = x_nchw.mean(axis=(0, 2, 3), keepdims=True)
    var = x_nchw.var(axis=(0, 2, 3), keepdims=True)   # biased
    xhat = (x_nchw - mean) / jnp.sqrt(var + EPS)
    y = gamma[None, :, None, None] * xhat + beta[None, :, None, None]
    y = jnp.maximum(y, 0.0)
    z = jnp.einsum('nihw,oi->nohw', y, w_oihw[:, :, 0, 0])
    n, co, hh, ww = z.shape
    return z.reshape(n, co, hh // 2, 2, ww // 2, 2).mean(axis=(3, 5))


if __name__ == "__main__":
    key = jax.random.PRNGKey(0)
    keys = jax.random.split(key, 8)

    # Test 1: small shapes from the module spec.
    N, Cin, H, W = 2, 4, 16, 16
    Cout = 8
    x = jax.random.normal(keys[0], (N, Cin, H, W), dtype=jnp.float32)
    w = jax.random.normal(keys[1], (Cout, Cin, 1, 1), dtype=jnp.float32) * (1.0 / Cin) ** 0.5
    gamma = 1.0 + 0.1 * jax.random.normal(keys[2], (Cin,), dtype=jnp.float32)
    beta = 0.1 * jax.random.normal(keys[3], (Cin,), dtype=jnp.float32)

    ref = transition_reference(x, w, gamma, beta)

    # f32 compute path: tight check against the pure-f32 reference.
    out_f32 = jax.block_until_ready(
        transition_forward(x, w, gamma, beta, compute_dtype=jnp.float32))
    assert out_f32.shape == (N, Cout, H // 2, W // 2)
    assert jnp.allclose(out_f32, ref, atol=1e-4, rtol=1e-4), "f32 path mismatch"

    # bf16 compute path (production default): bf16-appropriate tolerance
    # (staging, BN affine and MXU operands are all bf16; stats/accum f32).
    out_bf16 = jax.block_until_ready(transition_forward(x, w, gamma, beta))
    assert jnp.allclose(out_bf16, ref, atol=5e-2, rtol=5e-2), "bf16 path mismatch"

    # Test 2: exercises P/Cin/Cout padding and a multi-tile parallel grid
    # (tile_p forced small so num_tiles > 1 at these tiny shapes).
    N2, C2, H2, W2, Co2 = 3, 20, 20, 20, 24
    x2 = jax.random.normal(keys[4], (N2, C2, H2, W2), dtype=jnp.float32)
    w2 = jax.random.normal(keys[5], (Co2, C2, 1, 1), dtype=jnp.float32) * (1.0 / C2) ** 0.5
    g2 = 1.0 + 0.1 * jax.random.normal(keys[6], (C2,), dtype=jnp.float32)
    b2 = 0.1 * jax.random.normal(keys[7], (C2,), dtype=jnp.float32)

    ref2 = transition_reference(x2, w2, g2, b2)

    out2 = jax.block_until_ready(
        transition_forward(x2, w2, g2, b2, compute_dtype=jnp.float32, tile_p=128))
    assert out2.shape == (N2, Co2, H2 // 2, W2 // 2)
    assert jnp.allclose(out2, ref2, atol=1e-4, rtol=1e-4), "tiled f32 path mismatch"

    out2_bf16 = jax.block_until_ready(
        transition_forward(x2, w2, g2, b2, tile_p=128))
    assert jnp.allclose(out2_bf16, ref2, atol=5e-2, rtol=5e-2), "tiled bf16 path mismatch"

    print("KERNEL_OK")
</pallas_src>

<mosaic_0001>
module attributes {stable_mosaic.version = 11 : i64} {
  func.func @bn_stats_kernel(%arg0: i32, %arg1: memref<128x128xf32, #tpu.memory_space<vmem>>, %arg2: memref<8x128xf32, #tpu.memory_space<vmem>>) attributes {dimension_semantics = [#tpu.dimension_semantics<parallel>], iteration_bounds = array<i64: 4>, scalar_prefetch = 0 : i64, scratch_operands = 0 : i64, tpu.core_type = #tpu.core_type<tc>, window_params = [{transform_indices = @transform_0, window_bounds = array<i64: 128, 128>}, {transform_indices = @transform_1, window_bounds = array<i64: 8, 128>}]} {
    %c0 = arith.constant 0 : index
    %c0_0 = arith.constant 0 : index
    %0 = vector.load %arg1[%c0, %c0_0] : memref<128x128xf32, #tpu.memory_space<vmem>>, vector<128x128xf32>
    %cst = arith.constant dense<0.000000e+00> : vector<128xf32>
    %1 = vector.multi_reduction <add>, %0, %cst [0] : vector<128x128xf32> to vector<128xf32>
    %2 = vector.shape_cast %1 : vector<128xf32> to vector<1x128xf32>
    %3 = arith.mulf %0, %0 : vector<128x128xf32>
    %cst_1 = arith.constant dense<0.000000e+00> : vector<128xf32>
    %4 = vector.multi_reduction <add>, %3, %cst_1 [0] : vector<128x128xf32> to vector<128xf32>
    %5 = vector.shape_cast %4 : vector<128xf32> to vector<1x128xf32>
    %cst_2 = arith.constant 0.000000e+00 : f32
    %6 = vector.broadcast %cst_2 : f32 to vector<6x128xf32>
    %7 = tpu.concatenate %2, %5, %6 in 0 : vector<1x128xf32>, vector<1x128xf32>, vector<6x128xf32> -> vector<8x128xf32>
    %c0_3 = arith.constant 0 : index
    %c0_4 = arith.constant 0 : index
    %8 = vector.load %arg2[%c0_3, %c0_4] : memref<8x128xf32, #tpu.memory_space<vmem>>, vector<8x128xf32>
    tpu.vector_store %arg2[%c0_3, %c0_4], %7 {strides = array<i32>} : memref<8x128xf32, #tpu.memory_space<vmem>>, vector<8x128xf32>,
    return
  }
  func.func @transform_0(%arg0: i32) -> (i32, i32) {
    %c0_i32 = arith.constant 0 : i32
    %c0_i32_0 = arith.constant 0 : i32
    return %arg0, %c0_i32 : i32, i32
  }
  func.func @transform_1(%arg0: i32) -> (i32, i32) {
    %c0_i32 = arith.constant 0 : i32
    %c0_i32_0 = arith.constant 0 : i32
    return %arg0, %c0_i32 : i32, i32
  }
}

</mosaic_0001>

<llo_original>
// kernel: tpu_custom_call.1
$region0: #{tpu_custom_call.1}
  #allocation0 [shape = 'u32[]', space=smem, size = 0x4, offset = 0x4, fixed_abs, tag = 'smem constant byte address 0x4 - core index']
  #allocation1 [shape = 'u32[144,128]{1,0:T(1,128)}', space=vmem, size = 0x12000, scoped, tag = 'internal scratch']
  %s0 = inlined_call_operand.hbm [shape: f32[512,128], index: 0, kind: input, shape index: {}]
  %s1 = inlined_call_operand.hbm [shape: f32[32,128], index: 1, kind: output, shape index: {}]
  %s2 = sld [smem:[#allocation0]]
  $region41: #{tpu_custom_call.1} parent=0
    _
  %s4 = ssub.s32 1, %s2
  %s5 = scalar_select 0, %s4, %s2
  $region1: #{tpu_custom_call.1} parent=0
    #allocation2 [shape = 'u8[131072]{0}', space=vmem, size = 0x20000, scoped, tag = 'input window, operand 0']
    #allocation3 [shape = 's32[2]{0}', space=sflag, size = 0x8, scoped, tag = 'scoped memory for tpu_custom_call.1']
    #allocation4 [shape = 's32[2]{0}', space=sflag, size = 0x8, scoped, tag = 'scoped memory for tpu_custom_call.1']
    #allocation5 [shape = 'u8[8192]{0}', space=vmem, size = 0x2000, scoped, tag = 'output window, operand 0']
    %6 = vsyncpa [#allocation3], 0
    %s7 = scalar_lea.sflag [#allocation3], 1
    %8 = vsyncpa %s7, 0
    %9 = vsyncpa [#allocation4], 0
    %s10 = scalar_lea.sflag [#allocation4], 1
    %11 = vsyncpa %s10, 0
    loop: start=0, step=1, limit=6
    $region2: #{tpu_custom_call.1} parent=1 // loop_pre_header
      _
    $region3: #{tpu_custom_call.1} parent=1 // loop_header
      %s13 = sphi 0, %s17
      %p14 = scmp.ge.s32.totalorder %s13, 6
      %s23 = sphi 0, %s25
      %s26 = sphi 0, %s23
      %s27 = sphi 0, %s26
      %s43 = sphi 0, %s27
      %s49 = sphi 0, %s51
      %s52 = sphi 0, %s49
      %s53 = sphi 0, %s52
      %s69 = sphi 0, %s53
    $region4: #{tpu_custom_call.1} parent=1 // loop_header_branch
      %16 = sbr.rel (%p14) target = $region8
    $region5: #{tpu_custom_call.1} parent=1 // loop_body
      %s18 = ssub.s32 %s13, 1
      %s19 = ssub.s32 %s13, 2
      %s20 = sadd.s32 %s13, 1
      %s21 = ssub.s32 %s13, %s20
      %p22 = scmp.eq.s32.totalorder %s21, 0
      %s24 = sadd.s32 %s23, 1
      %s25 = scalar_select %p22, %s23, %s24
      %p28 = pneg %p22
      %p29 = scmp.eq.s32.totalorder %s13, 3
      %p30 = por %p28, %p29
      %p31 = scmp.ne.s32.totalorder %s23, %s26
      %p32 = scmp.eq.s32.totalorder %s13, 0
      %p33 = por %p31, %p32
      %p34 = scmp.ne.s32.totalorder %s23, %s26
      %p35 = scmp.eq.s32.totalorder %s18, 3
      %p36 = por %p34, %p35
      %p37 = scmp.ne.s32.totalorder %s26, %s27
      %p38 = scmp.eq.s32.totalorder %s18, 0
      %p39 = por %p37, %p38
      %p40 = scmp.ne.s32.totalorder %s26, %s27
      %p41 = scmp.eq.s32.totalorder %s19, 3
      %p42 = por %p40, %p41
      %p44 = scmp.ne.s32.totalorder %s27, %s43
      %p45 = scmp.eq.s32.totalorder %s19, 0
      %p46 = por %p44, %p45
      %s47 = ssub.s32 %s13, %s20
      %p48 = scmp.eq.s32.totalorder %s47, 0
      %s50 = sadd.s32 %s49, 1
      %s51 = scalar_select %p48, %s49, %s50
      %p54 = pneg %p48
      %p55 = scmp.eq.s32.totalorder %s13, 3
      %p56 = por %p54, %p55
      %p57 = scmp.ne.s32.totalorder %s49, %s52
      %p58 = scmp.eq.s32.totalorder %s13, 0
      %p59 = por %p57, %p58
      %p60 = scmp.ne.s32.totalorder %s49, %s52
      %p61 = scmp.eq.s32.totalorder %s18, 3
      %p62 = por %p60, %p61
      %p63 = scmp.ne.s32.totalorder %s52, %s53
      %p64 = scmp.eq.s32.totalorder %s18, 0
      %p65 = por %p63, %p64
      %p66 = scmp.ne.s32.totalorder %s52, %s53
      %p67 = scmp.eq.s32.totalorder %s19, 3
      %p68 = por %p66, %p67
      %p70 = scmp.ne.s32.totalorder %s53, %s69
      %p71 = scmp.eq.s32.totalorder %s19, 0
      %p72 = por %p70, %p71
      %p73 = scmp.le.s32.totalorder 1, %s13
      %p74 = scmp.lt.s32.totalorder %s13, 5
      %p75 = pnand %p73, %p74
      %p76 = pneg %p75
      // Predicated region
      $region9: #{tpu_custom_call.1} parent=5 // pred_check
        _
      $region10: #{tpu_custom_call.1} parent=5 // pred_check_branch
        %78 = sbr.rel (%p75) target = $region12
      $region11: #{tpu_custom_call.1} parent=5 // pred_region
        %s79 = ssub.s32 %s13, 1
      $region12: #{tpu_custom_call.1} parent=5 // pred_fallthru
        _
      %p80 = scmp.lt.s32.totalorder %s13, 4
      // Predicated region
      $region13: #{tpu_custom_call.1} parent=5 // pred_check
        %p81 = pneg %p80
      $region14: #{tpu_custom_call.1} parent=5 // pred_check_branch
        %83 = sbr.rel (%p81) target = $region16
      $region15: #{tpu_custom_call.1} parent=5 // pred_region
        // Predicated region
        $region17: #{tpu_custom_call.1} parent=15 // pred_check
          %p84 = pneg %p33
        $region18: #{tpu_custom_call.1} parent=15 // pred_check_branch
          %86 = sbr.rel (%p84) target = $region20
        $region19: #{tpu_custom_call.1} parent=15 // pred_region
          %s87 = sand.u32 %s23, 1
          %s88 = scalar_lea.sflag [#allocation3], %s87
          %s89 = sand.u32 %s23, 1
          %s90 = smul.addr %s89, 128
          %s91 = scalar_lea.vmem [#allocation2], %s90
          %s92 = smul.u32 16, %s13
          %s94 = ssub.s32 2048, 2048
          %95 = vsyncadd %s88, %s94
          %s96 = smul.addr %s92, 128
          %s97 = scalar_lea.hbm %s0, %s96
          %s98 = sshll.u32 %s91, 4
          %s99 = int_to_ptr.vmem [resolvable:$true] %s98
          %104 = dma.hbm_to_vmem [thread:$0]  %s97, 2048, %s99, %s88, 128, 128, 8
        $region20: #{tpu_custom_call.1} parent=15 // pred_fallthru
          _
      $region16: #{tpu_custom_call.1} parent=5 // pred_fallthru
        _
      %p105 = scmp.le.s32.totalorder 1, %s13
      %p106 = scmp.lt.s32.totalorder %s13, 5
      %p107 = pnand %p105, %p106
      %p108 = pneg %p107
      // Predicated region
      $region21: #{tpu_custom_call.1} parent=5 // pred_check
        _
      $region22: #{tpu_custom_call.1} parent=5 // pred_check_branch
        %110 = sbr.rel (%p107) target = $region24
      $region23: #{tpu_custom_call.1} parent=5 // pred_region
        %s111 = ssub.s32 %s13, 1
        %s112 = sand.u32 %s26, 1
        %s113 = scalar_lea.sflag [#allocation3], %s112
        %s114 = sand.u32 %s26, 1
        %s115 = smul.addr %s114, 128
        %s116 = scalar_lea.vmem [#allocation2], %s115
        // Predicated region
        $region25: #{tpu_custom_call.1} parent=23 // pred_check
          %p117 = pneg %p39
        $region26: #{tpu_custom_call.1} parent=23 // pred_check_branch
          %119 = sbr.rel (%p117) target = $region28
        $region27: #{tpu_custom_call.1} parent=23 // pred_region
          %120 = dma.done %s113, 2048
        $region28: #{tpu_custom_call.1} parent=23 // pred_fallthru
          _
        %s121 = sand.u32 %s26, 1
        %s122 = scalar_lea.sflag [#allocation3], %s121
        %s123 = sand.u32 %s26, 1
        %s124 = smul.addr %s123, 128
        %s125 = scalar_lea.vmem [#allocation2], %s124
        %p126 = pneg %p39
        %p127 = pneg %p36
        %p128 = pneg %p65
        %p129 = pneg %p62
        %s130 = sand.u32 %s52, 1
        %s131 = scalar_lea.sflag [#allocation4], %s130
        %s132 = sand.u32 %s52, 1
        %s133 = smul.addr %s132, 8
        %s134 = scalar_lea.vmem [#allocation5], %s133
        %s135 = smul.u32 16, %s18
        %v136 = vld [vmem:[%s116] sm:$0xff]
        %v137 = vld [vmem:[%s116 + $0x8] sm:$0xff]
        %v138 = vld [vmem:[%s116 + $0x10] sm:$0xff]
        %v139 = vld [vmem:[%s116 + $0x18] sm:$0xff]
        %v140 = vld [vmem:[%s116 + $0x20] sm:$0xff]
        %v141 = vld [vmem:[%s116 + $0x28] sm:$0xff]
        %v142 = vld [vmem:[%s116 + $0x30] sm:$0xff]
        %v143 = vld [vmem:[%s116 + $0x38] sm:$0xff]
        %v144 = vld [vmem:[%s116 + $0x40] sm:$0xff]
        %v145 = vld [vmem:[%s116 + $0x48] sm:$0xff]
        %v146 = vld [vmem:[%s116 + $0x50] sm:$0xff]
        %v147 = vld [vmem:[%s116 + $0x58] sm:$0xff]
        %v148 = vld [vmem:[%s116 + $0x60] sm:$0xff]
        %v149 = vld [vmem:[%s116 + $0x68] sm:$0xff]
        %v150 = vld [vmem:[%s116 + $0x70] sm:$0xff]
        %v151 = vld [vmem:[%s116 + $0x78] sm:$0xff]
        %v152 = vadd.f32 %v136, %v137
        %v153 = vadd.f32 %v152, %v138
        %v154 = vadd.f32 %v153, %v139
        %v155 = vadd.f32 %v154, %v140
        %v156 = vadd.f32 %v155, %v141
        %v157 = vadd.f32 %v156, %v142
        %v158 = vadd.f32 %v157, %v143
        %v159 = vadd.f32 %v158, %v144
        %v160 = vadd.f32 %v159, %v145
        %v161 = vadd.f32 %v160, %v146
        %v162 = vadd.f32 %v161, %v147
        %v163 = vadd.f32 %v162, %v148
        %v164 = vadd.f32 %v163, %v149
        %v165 = vadd.f32 %v164, %v150
        %v166 = vadd.f32 %v165, %v151
        %v167 = vrot.slane %v166, 4
        %v168 = vadd.f32 %v166, %v167
        %v169 = vrot.slane %v168, 2
        %v170 = vadd.f32 %v168, %v169
        %v171 = vrot.slane %v170, 1
        %v172 = vadd.f32 %v170, %v171
        %v173 = vmul.f32 %v136, %v136
        %v174 = vmul.f32 %v137, %v137
        %v175 = vmul.f32 %v138, %v138
        %v176 = vmul.f32 %v139, %v139
        %v177 = vmul.f32 %v140, %v140
        %v178 = vmul.f32 %v141, %v141
        %v179 = vmul.f32 %v142, %v142
        %v180 = vmul.f32 %v143, %v143
        %v181 = vmul.f32 %v144, %v144
        %v182 = vmul.f32 %v145, %v145
        %v183 = vmul.f32 %v146, %v146
        %v184 = vmul.f32 %v147, %v147
        %v185 = vmul.f32 %v148, %v148
        %v186 = vmul.f32 %v149, %v149
        %v187 = vmul.f32 %v150, %v150
        %v188 = vmul.f32 %v151, %v151
        %v189 = vadd.f32 %v173, %v174
        %v190 = vadd.f32 %v189, %v175
        %v191 = vadd.f32 %v190, %v176
        %v192 = vadd.f32 %v191, %v177
        %v193 = vadd.f32 %v192, %v178
        %v194 = vadd.f32 %v193, %v179
        %v195 = vadd.f32 %v194, %v180
        %v196 = vadd.f32 %v195, %v181
        %v197 = vadd.f32 %v196, %v182
        %v198 = vadd.f32 %v197, %v183
        %v199 = vadd.f32 %v198, %v184
        %v200 = vadd.f32 %v199, %v185
        %v201 = vadd.f32 %v200, %v186
        %v202 = vadd.f32 %v201, %v187
        %v203 = vadd.f32 %v202, %v188
        %v204 = vrot.slane %v203, 4
        %v205 = vadd.f32 %v203, %v204
        %v206 = vrot.slane %v205, 2
        %v207 = vadd.f32 %v205, %v206
        %v208 = vrot.slane %v207, 1
        %v209 = vadd.f32 %v207, %v208
        %vm210 = vcmask 1040384
        %v211 = vsel %vm210, %v172, %v209
        %vm212 = vcmask 1041408
        %v213 = vsel %vm212, %v211, 0.0
        %214 = vst [vmem:[%s134] sm:$0xff] %v213
        %s215 = sand.u32 %s52, 1
        %s216 = scalar_lea.sflag [#allocation4], %s215
        %s217 = sand.u32 %s52, 1
        %s218 = smul.addr %s217, 8
        %s219 = scalar_lea.vmem [#allocation5], %s218
        // Predicated region
        $region29: #{tpu_custom_call.1} parent=23 // pred_check
          %p220 = pneg %p62
        $region30: #{tpu_custom_call.1} parent=23 // pred_check_branch
          %222 = sbr.rel (%p220) target = $region32
        $region31: #{tpu_custom_call.1} parent=23 // pred_region
          %s224 = ssub.s32 128, 128
          %225 = vsyncadd %s216, %s224
          %s226 = smul.addr %s18, 128
          %s227 = scalar_lea.hbm %s1, %s226
          %s229 = sshll.u32 %s219, 4
          %s230 = int_to_ptr.vmem [resolvable:$true] %s229
          %232 = dma.vmem_to_hbm [thread:$0]  %s230, 128, %s227, %s216
        $region32: #{tpu_custom_call.1} parent=23 // pred_fallthru
          _
      $region24: #{tpu_custom_call.1} parent=5 // pred_fallthru
        _
      %p233 = scmp.le.s32.totalorder 2, %s13
      // Predicated region
      $region33: #{tpu_custom_call.1} parent=5 // pred_check
        %p234 = pneg %p233
      $region34: #{tpu_custom_call.1} parent=5 // pred_check_branch
        %236 = sbr.rel (%p234) target = $region36
      $region35: #{tpu_custom_call.1} parent=5 // pred_region
        %s237 = ssub.s32 %s13, 2
        // Predicated region
        $region37: #{tpu_custom_call.1} parent=35 // pred_check
          %p238 = pneg %p68
        $region38: #{tpu_custom_call.1} parent=35 // pred_check_branch
          %240 = sbr.rel (%p238) target = $region40
        $region39: #{tpu_custom_call.1} parent=35 // pred_region
          %s241 = sand.u32 %s53, 1
          %s242 = scalar_lea.sflag [#allocation4], %s241
          %s243 = sand.u32 %s53, 1
          %s244 = smul.addr %s243, 8
          %s245 = scalar_lea.vmem [#allocation5], %s244
          %246 = dma.done %s242, 128
        $region40: #{tpu_custom_call.1} parent=35 // pred_fallthru
          _
      $region36: #{tpu_custom_call.1} parent=5 // pred_fallthru
        _
    $region6: #{tpu_custom_call.1} parent=1 // loop_footer
      %s17 = sadd.s32 1, %s13
    $region7: #{tpu_custom_call.1} parent=1 // loop_footer_branch
      %12 = sbr.rel target = $region3
    $region8: #{tpu_custom_call.1} parent=1 // loop_exit
      _
    %247 = vsyncpa [#allocation3], 1
    %s248 = scalar_lea.sflag [#allocation3], 1
    %249 = vsyncpa %s248, 1
    %250 = vsyncpa [#allocation4], 1
    %s251 = scalar_lea.sflag [#allocation4], 1
    %252 = vsyncpa %s251, 1

</llo_original>
